<compile_context>
chip_gen: v7x
topology: tpu7x:2x2x1
jax: 0.10.0
libtpu: 0.0.40
codegen_flags: <defaults>
</compile_context>

<pallas_src>
import numpy as np
import jax
import jax.numpy as jnp
from jax.experimental import pallas as pl
from jax.experimental.pallas import tpu as pltpu

_LANE = 128
_TARGET_BLOCK_BYTES = 2 * 1024 * 1024   # ~2 MiB of data per block buffer


def _round_down(x, m):
    return (x // m) * m


def _native_sublanes(itemsize):
    # Native sublane packing: f32 -> (8,128), bf16/f16 -> (16,128), int8/fp8 -> (32,128).
    return {4: 8, 2: 16, 1: 32}.get(itemsize, 8)


def _choose_tiles(B, N, itemsize):
    """Pick (tile_b, tile_n) for the flattened (B, N) view.

    tile_n is a multiple of 128 (or the full dim when N < 128); tile_b is a
    multiple of the native sublane count (or the full dim when B is small), so
    every BlockSpec satisfies the TPU (8,128)-divisibility rule without any
    host-side padding.  Blocks target ~2 MiB of data each.
    """
    sub = _native_sublanes(itemsize)

    if N <= _LANE:
        tile_n = N                                   # == full dim
    else:
        max_cols = max(_LANE, _round_down(_TARGET_BLOCK_BYTES // (sub * itemsize), _LANE))
        tile_n = min(_round_down(N, _LANE), max_cols)

    if B <= sub:
        tile_b = B                                   # == full dim
    else:
        group_bytes = sub * tile_n * itemsize        # one fully packed sublane group
        groups = max(1, _TARGET_BLOCK_BYTES // group_bytes)
        tile_b = min(_round_down(B, sub), groups * sub)

    return tile_b, tile_n


def _dropsample_add_kernel(scale_ref, y_ref, skip_ref, o_ref):
    """o = y * scale[sample] + skip  (per-sample stochastic-depth scale + residual)."""
    y = y_ref[...].astype(jnp.float32)
    s = skip_ref[...].astype(jnp.float32)
    o_ref[...] = (y * scale_ref[...] + s).astype(o_ref.dtype)   # (tb,1) bcast over lanes


def dropsample_add(y, skip, *, prob, key):
    """Fused training-mode Dropsample(prob)(y) + skip.  y, skip are NCHW, same shape."""
    assert y.shape == skip.shape and y.dtype == skip.dtype
    assert 0.0 < prob < 1.0
    B = y.shape[0]
    N = int(np.prod(y.shape[1:]))
    itemsize = np.dtype(y.dtype).itemsize

    # Per-sample keep mask drawn outside the kernel; scale kept in f32 so that
    # 1/(1-p) is never rounded to a narrow dtype before the multiply.
    u = jax.random.uniform(key, (B,), dtype=jnp.float32)
    scale = (u > prob).astype(jnp.float32) * (1.0 / (1.0 - prob))   # strict '>' matches torch
    scale = scale.reshape(B, 1)

    # Free (no-copy) flattening; no pad, no slice.
    y2 = y.reshape(B, N)
    s2 = skip.reshape(B, N)

    tile_b, tile_n = _choose_tiles(B, N, itemsize)
    grid = (pl.cdiv(B, tile_b), pl.cdiv(N, tile_n))

    data_spec = pl.BlockSpec((tile_b, tile_n), lambda bi, ni: (bi, ni))
    scale_spec = pl.BlockSpec((tile_b, 1), lambda bi, ni: (bi, 0))

    out2 = pl.pallas_call(
        _dropsample_add_kernel,
        out_shape=jax.ShapeDtypeStruct((B, N), y.dtype),
        grid=grid,
        in_specs=[scale_spec, data_spec, data_spec],
        out_specs=data_spec,
        compiler_params=pltpu.CompilerParams(
            dimension_semantics=("parallel", "parallel"),     # megacore-shardable
            vmem_limit_bytes=32 * 1024 * 1024,                # headroom; safe on v5e/v6e/v7x
        ),
        cost_estimate=pl.CostEstimate(
            flops=2 * B * N,
            transcendentals=0,
            bytes_accessed=3 * B * N * itemsize + B * 4,
        ),
    )(scale, y2, s2)

    return out2.reshape(y.shape)


def mbconv_residual(fn, x, *, prob=0.0, training=True, key=None):
    """MBConvResidual.forward: dropsample(fn(x)) + x."""
    # TODO(synk): `fn` (the MBConv conv/BN/SE body) is an arbitrary user-supplied
    # sub-module; the ideal fix is fusing scale+residual into fn's last-op epilogue,
    # but here it is applied as a plain JAX callable and only dropsample+add is the kernel.
    out = fn(x)
    if prob == 0.0 or not training:
        # Dropsample is the identity here: plain residual add, left for XLA to fuse.
        return out + x
    if key is None:
        raise ValueError("training dropsample with prob > 0 requires a PRNG key")
    return dropsample_add(out, x, prob=prob, key=key)


if __name__ == "__main__":
    root = jax.random.PRNGKey(0)
    x_key, drop_key, x2_key, drop2_key = jax.random.split(root, 4)

    prob = 0.25
    fn = lambda t: 1.5 * t + 0.25      # simple stand-in for the wrapped MBConv body

    # Case 1: lane-aligned shape (N % 128 == 0).
    B, C, H, W = 2, 4, 16, 16
    x = jax.random.normal(x_key, (B, C, H, W), dtype=jnp.float32)
    y_eval = mbconv_residual(fn, x, prob=prob, training=False)
    y_train = mbconv_residual(fn, x, prob=prob, training=True, key=drop_key)

    # Case 2: ragged shape (N % 128 != 0) exercising masked partial blocks.
    B2, C2, H2, W2 = 3, 5, 7, 7
    x2 = jax.random.normal(x2_key, (B2, C2, H2, W2), dtype=jnp.float32)
    y2_train = mbconv_residual(fn, x2, prob=prob, training=True, key=drop2_key)

    jax.block_until_ready((y_eval, y_train, y2_train))

    def ref_train(xv, kv):
        fx = np.asarray(fn(xv))
        u = np.asarray(jax.random.uniform(kv, (xv.shape[0],), dtype=jnp.float32))
        keep = (u > prob).astype(np.float32).reshape(-1, 1, 1, 1)
        return fx * keep / (1.0 - prob) + np.asarray(xv)

    xn = np.asarray(x)
    fxn = np.asarray(fn(x))

    assert y_eval.shape == x.shape and y_train.shape == x.shape and y2_train.shape == x2.shape
    # Eval reference: fn(x) + x.
    assert np.allclose(np.asarray(y_eval), fxn + xn, rtol=1e-5, atol=1e-5)
    # Training references (same keep mask as drawn inside the wrapper).
    assert np.allclose(np.asarray(y_train), ref_train(x, drop_key), rtol=1e-5, atol=1e-5)
    assert np.allclose(np.asarray(y2_train), ref_train(x2, drop2_key), rtol=1e-5, atol=1e-5)

    # Every sample is either fully dropped (-> pure skip) or kept & rescaled.
    yt = np.asarray(y_train)
    for b in range(B):
        dropped = np.allclose(yt[b], xn[b], rtol=1e-5, atol=1e-5)
        kept = np.allclose(yt[b], fxn[b] / (1.0 - prob) + xn[b], rtol=1e-5, atol=1e-5)
        assert dropped or kept, f"sample {b} is neither dropped nor kept/rescaled"

    print("KERNEL_OK")
</pallas_src>

<mosaic_0001>
module attributes {stable_mosaic.version = 11 : i64} {
  func.func @_dropsample_add_kernel(%arg0: i32, %arg1: i32, %arg2: memref<2x1xf32, #tpu.memory_space<vmem>>, %arg3: memref<2x1024xf32, #tpu.memory_space<vmem>>, %arg4: memref<2x1024xf32, #tpu.memory_space<vmem>>, %arg5: memref<2x1024xf32, #tpu.memory_space<vmem>>) attributes {dimension_semantics = [#tpu.dimension_semantics<parallel>, #tpu.dimension_semantics<parallel>], iteration_bounds = array<i64: 1, 1>, scalar_prefetch = 0 : i64, scratch_operands = 0 : i64, tpu.core_type = #tpu.core_type<tc>, window_params = [{transform_indices = @transform_0, window_bounds = array<i64: 2, 1>}, {transform_indices = @transform_1, window_bounds = array<i64: 2, 1024>}, {transform_indices = @transform_2, window_bounds = array<i64: 2, 1024>}, {transform_indices = @transform_3, window_bounds = array<i64: 2, 1024>}]} {
    %c0 = arith.constant 0 : index
    %c0_0 = arith.constant 0 : index
    %0 = vector.load %arg3[%c0, %c0_0] : memref<2x1024xf32, #tpu.memory_space<vmem>>, vector<2x1024xf32>
    %c0_1 = arith.constant 0 : index
    %c0_2 = arith.constant 0 : index
    %1 = vector.load %arg4[%c0_1, %c0_2] : memref<2x1024xf32, #tpu.memory_space<vmem>>, vector<2x1024xf32>
    %c0_3 = arith.constant 0 : index
    %c0_4 = arith.constant 0 : index
    %2 = vector.load %arg2[%c0_3, %c0_4] : memref<2x1xf32, #tpu.memory_space<vmem>>, vector<2x1xf32>
    %3 = vector.broadcast %2 : vector<2x1xf32> to vector<2x1024xf32>
    %4 = arith.mulf %0, %3 : vector<2x1024xf32>
    %5 = arith.addf %4, %1 : vector<2x1024xf32>
    %c0_5 = arith.constant 0 : index
    %c0_6 = arith.constant 0 : index
    %6 = vector.load %arg5[%c0_5, %c0_6] : memref<2x1024xf32, #tpu.memory_space<vmem>>, vector<2x1024xf32>
    tpu.vector_store %arg5[%c0_5, %c0_6], %5 {strides = array<i32>} : memref<2x1024xf32, #tpu.memory_space<vmem>>, vector<2x1024xf32>,
    return
  }
  func.func @transform_0(%arg0: i32, %arg1: i32) -> (i32, i32) {
    %c0_i32 = arith.constant 0 : i32
    %c0_i32_0 = arith.constant 0 : i32
    return %arg0, %c0_i32 : i32, i32
  }
  func.func @transform_1(%arg0: i32, %arg1: i32) -> (i32, i32) {
    %c0_i32 = arith.constant 0 : i32
    return %arg0, %arg1 : i32, i32
  }
  func.func @transform_2(%arg0: i32, %arg1: i32) -> (i32, i32) {
    %c0_i32 = arith.constant 0 : i32
    return %arg0, %arg1 : i32, i32
  }
  func.func @transform_3(%arg0: i32, %arg1: i32) -> (i32, i32) {
    %c0_i32 = arith.constant 0 : i32
    return %arg0, %arg1 : i32, i32
  }
}

</mosaic_0001>

<llo_original>
// kernel: tpu_custom_call.1
$region0: #{tpu_custom_call.1}
  #allocation0 [shape = 'u32[]', space=smem, size = 0x4, offset = 0x4, fixed_abs, tag = 'smem constant byte address 0x4 - core index']
  #allocation1 [shape = 'u32[144,128]{1,0:T(1,128)}', space=vmem, size = 0x12000, scoped, tag = 'internal scratch']
  %s0 = inlined_call_operand.vmem [shape: f32[2,1], index: 0, kind: input, shape index: {}]
  %s1 = inlined_call_operand.hbm [shape: f32[2,1024], index: 1, kind: input, shape index: {}]
  %s2 = inlined_call_operand.hbm [shape: f32[2,1024], index: 2, kind: input, shape index: {}]
  %s3 = inlined_call_operand.hbm [shape: f32[2,1024], index: 3, kind: output, shape index: {}]
  %s4 = sld [smem:[#allocation0]]
  $region30: #{tpu_custom_call.1} parent=0
    _
  %s6 = ssub.s32 1, %s4
  %s7 = scalar_select 0, %s6, %s4
  $region1: #{tpu_custom_call.1} parent=0
    #allocation2 [shape = 'u8[8192]{0}', space=vmem, size = 0x2000, scoped, tag = 'input window, operand 1, single buffered']
    #allocation3 [shape = 's32[1]{0}', space=sflag, size = 0x4, scoped, tag = 'scoped memory for tpu_custom_call.1']
    #allocation4 [shape = 's32[1]{0}', space=sflag, size = 0x4, scoped, tag = 'scoped memory for tpu_custom_call.1']
    #allocation5 [shape = 'u8[8192]{0}', space=vmem, size = 0x2000, scoped, tag = 'input window, operand 2, single buffered']
    #allocation6 [shape = 's32[1]{0}', space=sflag, size = 0x4, scoped, tag = 'scoped memory for tpu_custom_call.1']
    #allocation7 [shape = 'u8[8192]{0}', space=vmem, size = 0x2000, scoped, tag = 'output window, operand 0, single buffered']
    %8 = vsyncpa [#allocation3], 0
    %9 = vsyncpa [#allocation6], 0
    %10 = vsyncpa [#allocation4], 0
    // Predicated region
    $region2: #{tpu_custom_call.1} parent=1 // pred_check
      _
    $region3: #{tpu_custom_call.1} parent=1 // pred_check_branch
      %12 = sbr.rel (0) target = $region5
    $region4: #{tpu_custom_call.1} parent=1 // pred_region
      _
    $region5: #{tpu_custom_call.1} parent=1 // pred_fallthru
      _
    // Predicated region
    $region6: #{tpu_custom_call.1} parent=1 // pred_check
      _
    $region7: #{tpu_custom_call.1} parent=1 // pred_check_branch
      %14 = sbr.rel (0) target = $region9
    $region8: #{tpu_custom_call.1} parent=1 // pred_region
      %s16 = ssub.s32 256, 256
      %17 = vsyncadd [#allocation3], %s16
      %s19 = sshll.u32 [#allocation2], 4
      %s20 = int_to_ptr.vmem [resolvable:$true] %s19
      %22 = dma.hbm_to_vmem [thread:$0]  %s1, 256, %s20, [#allocation3]
    $region9: #{tpu_custom_call.1} parent=1 // pred_fallthru
      _
    // Predicated region
    $region10: #{tpu_custom_call.1} parent=1 // pred_check
      _
    $region11: #{tpu_custom_call.1} parent=1 // pred_check_branch
      %24 = sbr.rel (0) target = $region13
    $region12: #{tpu_custom_call.1} parent=1 // pred_region
      %s26 = ssub.s32 256, 256
      %27 = vsyncadd [#allocation6], %s26
      %s29 = sshll.u32 [#allocation5], 4
      %s30 = int_to_ptr.vmem [resolvable:$true] %s29
      %32 = dma.hbm_to_vmem [thread:$0]  %s2, 256, %s30, [#allocation6]
    $region13: #{tpu_custom_call.1} parent=1 // pred_fallthru
      _
    // Predicated region
    $region14: #{tpu_custom_call.1} parent=1 // pred_check
      _
    $region15: #{tpu_custom_call.1} parent=1 // pred_check_branch
      %34 = sbr.rel (0) target = $region17
    $region16: #{tpu_custom_call.1} parent=1 // pred_region
      %35 = dma.done [#allocation3], 256
    $region17: #{tpu_custom_call.1} parent=1 // pred_fallthru
      _
    // Predicated region
    $region18: #{tpu_custom_call.1} parent=1 // pred_check
      _
    $region19: #{tpu_custom_call.1} parent=1 // pred_check_branch
      %37 = sbr.rel (0) target = $region21
    $region20: #{tpu_custom_call.1} parent=1 // pred_region
      %38 = dma.done [#allocation6], 256
    $region21: #{tpu_custom_call.1} parent=1 // pred_fallthru
      _
    %v39 = vld [vmem:[#allocation2] sm:$0xff]
    %v40 = vld [vmem:[#allocation2 + $0x8] sm:$0xff]
    %v41 = vld [vmem:[#allocation5] sm:$0xff]
    %v42 = vld [vmem:[#allocation5 + $0x8] sm:$0xff]
    %v43 = vld [vmem:[%s0] sm:$0x3]
    %45 = vset.pattern.permute.xlu0 0
    %46 = vperm.xlu0 %45, %v43
    %v47 = vpop.permute.xlu0 %46
    %v49 = vunpack.c.l.s4 269488144
    %v50 = vunpack.c.0.s8 %v49
    %v51 = vlaneseq
    %v52 = vshrl.u32 %v51, 7
    %v53 = vsub.s32 %v50, %v52
    %v54 = vrot.slane %v47, %v53
    %v56 = vmul.f32 %v39, %v54
    %v57 = vmul.f32 %v40, %v54
    %v58 = vadd.f32 %v56, %v41
    %v59 = vadd.f32 %v57, %v42
    %60 = vst [vmem:[#allocation7] sm:$0xff] %v58
    %61 = vst [vmem:[#allocation7 + $0x8] sm:$0xff] %v59
    // Predicated region
    $region22: #{tpu_custom_call.1} parent=1 // pred_check
      _
    $region23: #{tpu_custom_call.1} parent=1 // pred_check_branch
      %63 = sbr.rel (0) target = $region25
    $region24: #{tpu_custom_call.1} parent=1 // pred_region
      %s65 = ssub.s32 256, 256
      %66 = vsyncadd [#allocation4], %s65
      %s68 = sshll.u32 [#allocation7], 4
      %s69 = int_to_ptr.vmem [resolvable:$true] %s68
      %71 = dma.vmem_to_hbm [thread:$0]  %s69, 256, %s3, [#allocation4]
    $region25: #{tpu_custom_call.1} parent=1 // pred_fallthru
      _
    // Predicated region
    $region26: #{tpu_custom_call.1} parent=1 // pred_check
      _
    $region27: #{tpu_custom_call.1} parent=1 // pred_check_branch
      %73 = sbr.rel (0) target = $region29
    $region28: #{tpu_custom_call.1} parent=1 // pred_region
      %74 = dma.done [#allocation4], 256
    $region29: #{tpu_custom_call.1} parent=1 // pred_fallthru
      _
    %75 = vsyncpa [#allocation3], 1
    %76 = vsyncpa [#allocation6], 1
    %77 = vsyncpa [#allocation4], 1

</llo_original>
